<compile_context>
chip_gen: v6e
topology: v6e:2x2x1
jax: 0.10.0
libtpu: 0.0.40
codegen_flags: <defaults>
</compile_context>

<pallas_src>
import functools

import jax
import jax.numpy as jnp
from jax.experimental import pallas as pl
from jax.experimental.pallas import tpu as pltpu


def _round_up(x, m):
    return (x + m - 1) // m * m


def bigram_kernel(idx_ref, tgt_ref, embed_ref, logits_ref, rowloss_ref, *, v_true):
    # idx_ref, tgt_ref : (tn, 1)  int32   (row tile of token ids / targets)
    # embed_ref        : (Vp, Vp) float32 (zero-padded embedding table, resident)
    # logits_ref       : (tn, Vp) float32 (lane-dense output tile)
    # rowloss_ref      : (tn, 1)  float32 (per-row cross-entropy term)
    tn = idx_ref.shape[0]
    vp = embed_ref.shape[1]

    idx = idx_ref[...]                                           # (tn, 1)
    tgt = tgt_ref[...]                                           # (tn, 1)

    # Single per-tile iota reused for the gather one-hot, the target pick and
    # the padded-column mask.
    col = jax.lax.broadcasted_iota(jnp.int32, (tn, vp), 1)       # (tn, vp)

    # Embedding gather as one-hot @ table on the MXU (V is small; table resident).
    onehot_idx = (col == idx).astype(jnp.float32)                # (tn, vp)
    logits = jnp.dot(onehot_idx, embed_ref[...],
                     preferred_element_type=jnp.float32)         # (tn, vp)
    logits_ref[...] = logits

    # Cross-entropy per row: logsumexp over the *valid* vocab minus target logit.
    neg = jnp.float32(-1e30)
    masked = jnp.where(col < v_true, logits, neg)                # kill padded cols
    m = jnp.max(masked, axis=-1, keepdims=True)                  # (tn, 1)
    lse = m + jnp.log(jnp.sum(jnp.exp(masked - m), axis=-1, keepdims=True))
    picked = jnp.sum(jnp.where(col == tgt, logits, 0.0),
                     axis=-1, keepdims=True)                     # (tn, 1)
    rowloss_ref[...] = lse - picked


def bigram_forward(idx, targets, embed_table, *, tile_rows=256):
    """Equivalent of BigramLM.forward(idx, targets).

    With targets: returns (logits of shape (B*T, V) float32, scalar mean CE loss).
    With targets=None: returns (logits of shape (B, T, V), None).
    """
    B, T = idx.shape
    V = embed_table.shape[0]
    N = B * T

    no_targets = targets is None
    if no_targets:
        targets = jnp.zeros((B, T), jnp.int32)

    # Lane-align the vocab and sublane-align the row count.
    Vp = _round_up(V, 128)
    tn = min(tile_rows, _round_up(N, 8))
    N_pad = _round_up(N, tn)
    grid = (N_pad // tn,)

    embed_pad = jnp.pad(embed_table.astype(jnp.float32),
                        ((0, Vp - V), (0, Vp - V)))
    idx_flat = jnp.pad(idx.reshape(N).astype(jnp.int32), (0, N_pad - N)).reshape(N_pad, 1)
    tgt_flat = jnp.pad(targets.reshape(N).astype(jnp.int32), (0, N_pad - N)).reshape(N_pad, 1)

    kernel = functools.partial(bigram_kernel, v_true=V)

    cost = pl.CostEstimate(
        flops=2 * N_pad * Vp * Vp,
        transcendentals=N_pad * Vp + N_pad,
        bytes_accessed=Vp * Vp * 4 + N_pad * Vp * 4 + 3 * N_pad * 4,
    )

    logits_pad, rowloss = pl.pallas_call(
        kernel,
        out_shape=(
            jax.ShapeDtypeStruct((N_pad, Vp), jnp.float32),
            jax.ShapeDtypeStruct((N_pad, 1), jnp.float32),
        ),
        grid_spec=pltpu.PrefetchScalarGridSpec(
            num_scalar_prefetch=0,
            grid=grid,
            in_specs=[
                pl.BlockSpec((tn, 1), lambda i: (i, 0)),    # idx row tile
                pl.BlockSpec((tn, 1), lambda i: (i, 0)),    # tgt row tile
                pl.BlockSpec((Vp, Vp), lambda i: (0, 0)),   # table, resident
            ],
            out_specs=(
                pl.BlockSpec((tn, Vp), lambda i: (i, 0)),   # lane-dense logits
                pl.BlockSpec((tn, 1), lambda i: (i, 0)),    # per-row loss term
            ),
        ),
        compiler_params=pltpu.CompilerParams(
            dimension_semantics=("parallel",),
            vmem_limit_bytes=32 * 1024 * 1024,
        ),
        cost_estimate=cost,
    )(idx_flat, tgt_flat, embed_pad)

    logits = logits_pad[:N, :V]
    if no_targets:
        return logits.reshape(B, T, V), None
    loss = jnp.sum(rowloss[:N, 0]) / N
    return logits, loss


def bigram_forward_ref(idx, targets, embed_table):
    # Pure-JAX reference for a correctness check.
    B, T = idx.shape
    logits = embed_table[idx]                           # (B, T, V)
    V = logits.shape[-1]
    logits = logits.reshape(B * T, V)
    tgt = targets.reshape(B * T)
    lse = jax.scipy.special.logsumexp(logits, axis=-1)
    picked = jnp.take_along_axis(logits, tgt[:, None], axis=-1)[:, 0]
    loss = jnp.mean(lse - picked)
    return logits, loss


if __name__ == "__main__":
    vocab_size = 65   # e.g. tiny-shakespeare character vocab
    B, T = 2, 8

    key = jax.random.PRNGKey(0)
    k_emb, k_idx, k_tgt = jax.random.split(key, 3)

    # nn.Embedding default init: N(0, 1)
    embed_table = jax.random.normal(k_emb, (vocab_size, vocab_size), jnp.float32)
    idx = jax.random.randint(k_idx, (B, T), 0, vocab_size, jnp.int32)
    targets = jax.random.randint(k_tgt, (B, T), 0, vocab_size, jnp.int32)

    logits, loss = bigram_forward(idx, targets, embed_table)
    logits = jax.block_until_ready(logits)
    loss = jax.block_until_ready(loss)

    logits_ref, loss_ref = bigram_forward_ref(idx, targets, embed_table)
    assert logits.shape == (B * T, vocab_size)
    assert jnp.allclose(logits, logits_ref, atol=1e-4), "logits mismatch"
    assert jnp.allclose(loss, loss_ref, atol=1e-4), "loss mismatch"

    # targets=None path (inference-style), shape check only.
    logits_nt, loss_nt = bigram_forward(idx, None, embed_table)
    logits_nt = jax.block_until_ready(logits_nt)
    assert logits_nt.shape == (B, T, vocab_size)
    assert loss_nt is None
    assert jnp.allclose(logits_nt.reshape(B * T, vocab_size), logits_ref, atol=1e-4)

    print("KERNEL_OK")
</pallas_src>

<mosaic_0001>
module attributes {stable_mosaic.version = 11 : i64} {
  func.func @bigram_kernel(%arg0: i32, %arg1: memref<16x1xi32, #tpu.memory_space<vmem>>, %arg2: memref<16x1xi32, #tpu.memory_space<vmem>>, %arg3: memref<128x128xf32, #tpu.memory_space<vmem>>, %arg4: memref<16x128xf32, #tpu.memory_space<vmem>>, %arg5: memref<16x1xf32, #tpu.memory_space<vmem>>) attributes {dimension_semantics = [#tpu.dimension_semantics<parallel>], iteration_bounds = array<i64: 1>, scalar_prefetch = 0 : i64, scratch_operands = 0 : i64, tpu.core_type = #tpu.core_type<tc>, window_params = [{transform_indices = @transform_0, window_bounds = array<i64: 16, 1>}, {transform_indices = @transform_1, window_bounds = array<i64: 16, 1>}, {pipeline_mode = #tpu.pipeline_mode<synchronous>, transform_indices = @transform_2, window_bounds = array<i64: 128, 128>}, {transform_indices = @transform_3, window_bounds = array<i64: 16, 128>}, {transform_indices = @transform_4, window_bounds = array<i64: 16, 1>}]} {
    %c0 = arith.constant 0 : index
    %c0_0 = arith.constant 0 : index
    %0 = vector.load %arg1[%c0, %c0_0] : memref<16x1xi32, #tpu.memory_space<vmem>>, vector<16x1xi32>
    %c0_1 = arith.constant 0 : index
    %c0_2 = arith.constant 0 : index
    %1 = vector.load %arg2[%c0_1, %c0_2] : memref<16x1xi32, #tpu.memory_space<vmem>>, vector<16x1xi32>
    %2 = tpu.iota {dimensions = array<i32: 1>} : vector<16x128xi32>
    %3 = vector.broadcast %0 : vector<16x1xi32> to vector<16x128xi32>
    %4 = arith.cmpi eq, %2, %3 : vector<16x128xi32>
    %5 = arith.extui %4 : vector<16x128xi1> to vector<16x128xi32>
    %6 = arith.sitofp %5 : vector<16x128xi32> to vector<16x128xf32>
    %c0_3 = arith.constant 0 : index
    %c0_4 = arith.constant 0 : index
    %7 = vector.load %arg3[%c0_3, %c0_4] : memref<128x128xf32, #tpu.memory_space<vmem>>, vector<128x128xf32>
    %cst = arith.constant dense<0.000000e+00> : vector<16x128xf32>
    %8 = tpu.matmul %6, %7, %cst {dimension_numbers = #tpu.dot_dimension_numbers<[1], [0], [0], [1], [0, 0, 1, 1], [], []>} : vector<16x128xf32>, vector<128x128xf32>, vector<16x128xf32> -> vector<16x128xf32>
    %c0_5 = arith.constant 0 : index
    %c0_6 = arith.constant 0 : index
    %9 = vector.load %arg4[%c0_5, %c0_6] : memref<16x128xf32, #tpu.memory_space<vmem>>, vector<16x128xf32>
    tpu.vector_store %arg4[%c0_5, %c0_6], %8 {strides = array<i32>} : memref<16x128xf32, #tpu.memory_space<vmem>>, vector<16x128xf32>,
    %c65_i32 = arith.constant 65 : i32
    %10 = vector.broadcast %c65_i32 : i32 to vector<16x128xi32>
    %11 = arith.cmpi slt, %2, %10 : vector<16x128xi32>
    %cst_7 = arith.constant -1.000000e+30 : f32
    %12 = vector.broadcast %cst_7 : f32 to vector<16x128xf32>
    %13 = arith.select %11, %8, %12 : vector<16x128xi1>, vector<16x128xf32>
    %cst_8 = arith.constant dense<0xFF800000> : vector<16xf32>
    %14 = vector.multi_reduction <maximumf>, %13, %cst_8 [1] : vector<16x128xf32> to vector<16xf32>
    %15 = vector.shape_cast %14 : vector<16xf32> to vector<16x1xf32>
    %16 = vector.broadcast %15 : vector<16x1xf32> to vector<16x128xf32>
    %17 = arith.subf %13, %16 : vector<16x128xf32>
    %18 = math.exp %17 : vector<16x128xf32>
    %cst_9 = arith.constant dense<0.000000e+00> : vector<16xf32>
    %19 = vector.multi_reduction <add>, %18, %cst_9 [1] : vector<16x128xf32> to vector<16xf32>
    %20 = vector.shape_cast %19 : vector<16xf32> to vector<16x1xf32>
    %21 = math.log %20 : vector<16x1xf32>
    %22 = arith.addf %15, %21 : vector<16x1xf32>
    %23 = vector.broadcast %1 : vector<16x1xi32> to vector<16x128xi32>
    %24 = arith.cmpi eq, %2, %23 : vector<16x128xi32>
    %cst_10 = arith.constant 0.000000e+00 : f32
    %25 = vector.broadcast %cst_10 : f32 to vector<16x128xf32>
    %26 = arith.select %24, %8, %25 : vector<16x128xi1>, vector<16x128xf32>
    %cst_11 = arith.constant dense<0.000000e+00> : vector<16xf32>
    %27 = vector.multi_reduction <add>, %26, %cst_11 [1] : vector<16x128xf32> to vector<16xf32>
    %28 = vector.shape_cast %27 : vector<16xf32> to vector<16x1xf32>
    %29 = arith.subf %22, %28 : vector<16x1xf32>
    %c0_12 = arith.constant 0 : index
    %c0_13 = arith.constant 0 : index
    %30 = vector.load %arg5[%c0_12, %c0_13] : memref<16x1xf32, #tpu.memory_space<vmem>>, vector<16x1xf32>
    tpu.vector_store %arg5[%c0_12, %c0_13], %29 {strides = array<i32>} : memref<16x1xf32, #tpu.memory_space<vmem>>, vector<16x1xf32>,
    return
  }
  func.func @transform_0(%arg0: i32) -> (i32, i32) {
    %c0_i32 = arith.constant 0 : i32
    %c0_i32_0 = arith.constant 0 : i32
    return %arg0, %c0_i32 : i32, i32
  }
  func.func @transform_1(%arg0: i32) -> (i32, i32) {
    %c0_i32 = arith.constant 0 : i32
    %c0_i32_0 = arith.constant 0 : i32
    return %arg0, %c0_i32 : i32, i32
  }
  func.func @transform_2(%arg0: i32) -> (i32, i32) {
    %c0_i32 = arith.constant 0 : i32
    %c0_i32_0 = arith.constant 0 : i32
    %c0_i32_1 = arith.constant 0 : i32
    return %c0_i32, %c0_i32_0 : i32, i32
  }
  func.func @transform_3(%arg0: i32) -> (i32, i32) {
    %c0_i32 = arith.constant 0 : i32
    %c0_i32_0 = arith.constant 0 : i32
    return %arg0, %c0_i32 : i32, i32
  }
  func.func @transform_4(%arg0: i32) -> (i32, i32) {
    %c0_i32 = arith.constant 0 : i32
    %c0_i32_0 = arith.constant 0 : i32
    return %arg0, %c0_i32 : i32, i32
  }
}

</mosaic_0001>

<llo_original>
// kernel: tpu_custom_call.1
$region0: #{tpu_custom_call.1}
  #allocation0 [shape = 'u32[]', space=smem, size = 0x4, offset = 0x4, fixed_abs, tag = 'smem constant byte address 0x4 - core index']
  #allocation1 [shape = 'u32[144,128]{1,0:T(1,128)}', space=vmem, size = 0x12000, scoped, tag = 'internal scratch']
  %s0 = inlined_call_operand.vmem [shape: s32[16,1], index: 0, kind: input, shape index: {}]
  %s1 = inlined_call_operand.vmem [shape: s32[16,1], index: 1, kind: input, shape index: {}]
  %s2 = inlined_call_operand.hbm [shape: f32[128,128], index: 2, kind: input, shape index: {}]
  %s3 = inlined_call_operand.hbm [shape: f32[16,128], index: 3, kind: output, shape index: {0}]
  %s4 = inlined_call_operand.vmem [shape: f32[16,1], index: 4, kind: output, shape index: {1}]
  %5 = xla_tuple %s3, %s4
  %s6 = sld [smem:[#allocation0]]
  $region34: #{tpu_custom_call.1} parent=0
    _
  %s8 = ssub.s32 1, %s6
  %s9 = scalar_select 0, %s8, %s6
  $region1: #{tpu_custom_call.1} parent=0
    #allocation2 [shape = 'u8[65536]{0}', space=vmem, size = 0x10000, scoped, tag = 'input window, operand 2, single buffered']
    #allocation3 [shape = 's32[1]{0}', space=sflag, size = 0x4, scoped, tag = 'scoped memory for tpu_custom_call.1']
    #allocation4 [shape = 's32[1]{0}', space=sflag, size = 0x4, scoped, tag = 'scoped memory for tpu_custom_call.1']
    #allocation5 [shape = 'u8[8192]{0}', space=vmem, size = 0x2000, scoped, tag = 'output window, operand 0, single buffered']
    %10 = vsyncpa [#allocation3], 0
    %11 = vsyncpa [#allocation4], 0
    // Predicated region
    $region2: #{tpu_custom_call.1} parent=1 // pred_check
      _
    $region3: #{tpu_custom_call.1} parent=1 // pred_check_branch
      %13 = sbr.rel (0) target = $region5
    $region4: #{tpu_custom_call.1} parent=1 // pred_region
      _
    $region5: #{tpu_custom_call.1} parent=1 // pred_fallthru
      _
    // Predicated region
    $region6: #{tpu_custom_call.1} parent=1 // pred_check
      _
    $region7: #{tpu_custom_call.1} parent=1 // pred_check_branch
      %15 = sbr.rel (0) target = $region9
    $region8: #{tpu_custom_call.1} parent=1 // pred_region
      _
    $region9: #{tpu_custom_call.1} parent=1 // pred_fallthru
      _
    // Predicated region
    $region10: #{tpu_custom_call.1} parent=1 // pred_check
      _
    $region11: #{tpu_custom_call.1} parent=1 // pred_check_branch
      %17 = sbr.rel (0) target = $region13
    $region12: #{tpu_custom_call.1} parent=1 // pred_region
      %s19 = ssub.s32 2048, 2048
      %20 = vsyncadd [#allocation3], %s19
      %s21 = sshll.u32 [#allocation2], 4
      %s22 = int_to_ptr.vmem [resolvable:$true] %s21
      %27 = dma.hbm_to_vmem [thread:$0]  %s2, 2048, %s22, [#allocation3], 128, 128, 8
    $region13: #{tpu_custom_call.1} parent=1 // pred_fallthru
      _
    // Predicated region
    $region14: #{tpu_custom_call.1} parent=1 // pred_check
      _
    $region15: #{tpu_custom_call.1} parent=1 // pred_check_branch
      %29 = sbr.rel (0) target = $region17
    $region16: #{tpu_custom_call.1} parent=1 // pred_region
      %30 = dma.done [#allocation3], 2048
    $region17: #{tpu_custom_call.1} parent=1 // pred_fallthru
      _
    %v31 = vld [vmem:[%s0] sm:$0xff]
    %v32 = vld [vmem:[%s0 + $0x8] sm:$0xff]
    %v33 = vld [vmem:[%s1] sm:$0xff]
    %v34 = vld [vmem:[%s1 + $0x8] sm:$0xff]
    %v35 = vlaneseq
    %v36 = vand.u32 %v35, 127
    %37 = vset.pattern.permute.xlu0 0
    %38 = vperm.xlu0 %37, %v31
    %v39 = vpop.permute.xlu0 %38
    %40 = vset.pattern.permute.xlu0 0
    %41 = vperm.xlu0 %40, %v32
    %v42 = vpop.permute.xlu0 %41
    %vm43 = vcmp.eq.s32.totalorder %v36, %v39
    %vm44 = vcmp.eq.s32.totalorder %v36, %v42
    %v45 = vsel %vm43, 1, 0
    %v46 = vsel %vm44, 1, 0
    %v47 = vcvt.s32.f32 %v45
    %v48 = vcvt.s32.f32 %v46
    %v49 = vld [vmem:[#allocation2] sm:$0xff]
    %v50 = vld [vmem:[#allocation2 + $0x8] sm:$0xff]
    %v51 = vld [vmem:[#allocation2 + $0x10] sm:$0xff]
    %v52 = vld [vmem:[#allocation2 + $0x18] sm:$0xff]
    %v53 = vld [vmem:[#allocation2 + $0x20] sm:$0xff]
    %v54 = vld [vmem:[#allocation2 + $0x28] sm:$0xff]
    %v55 = vld [vmem:[#allocation2 + $0x30] sm:$0xff]
    %v56 = vld [vmem:[#allocation2 + $0x38] sm:$0xff]
    %v57 = vld [vmem:[#allocation2 + $0x40] sm:$0xff]
    %v58 = vld [vmem:[#allocation2 + $0x48] sm:$0xff]
    %v59 = vld [vmem:[#allocation2 + $0x50] sm:$0xff]
    %v60 = vld [vmem:[#allocation2 + $0x58] sm:$0xff]
    %v61 = vld [vmem:[#allocation2 + $0x60] sm:$0xff]
    %v62 = vld [vmem:[#allocation2 + $0x68] sm:$0xff]
    %v63 = vld [vmem:[#allocation2 + $0x70] sm:$0xff]
    %v64 = vld [vmem:[#allocation2 + $0x78] sm:$0xff]
    %65 = vmatprep.subr.mxu0 0.0
    %66 = vmatpush1.msra.mxu0 %v64
    %67 = vmatprep.subr.mxu0 0.0
    %68 = vmatpush1.msra.mxu0 %v63
    %69 = vmatprep.subr.mxu0 0.0
    %70 = vmatpush1.msra.mxu0 %v62
    %71 = vmatprep.subr.mxu0 0.0
    %72 = vmatpush1.msra.mxu0 %v61
    %73 = vmatprep.subr.mxu0 0.0
    %74 = vmatpush1.msra.mxu0 %v60
    %75 = vmatprep.subr.mxu0 0.0
    %76 = vmatpush1.msra.mxu0 %v59
    %77 = vmatprep.subr.mxu0 0.0
    %78 = vmatpush1.msra.mxu0 %v58
    %79 = vmatprep.subr.mxu0 0.0
    %80 = vmatpush1.msra.mxu0 %v57
    %81 = vmatprep.subr.mxu0 0.0
    %82 = vmatpush1.msra.mxu0 %v56
    %83 = vmatprep.subr.mxu0 0.0
    %84 = vmatpush1.msra.mxu0 %v55
    %85 = vmatprep.subr.mxu0 0.0
    %86 = vmatpush1.msra.mxu0 %v54
    %87 = vmatprep.subr.mxu0 0.0
    %88 = vmatpush1.msra.mxu0 %v53
    %89 = vmatprep.subr.mxu0 0.0
    %90 = vmatpush1.msra.mxu0 %v52
    %91 = vmatprep.subr.mxu0 0.0
    %92 = vmatpush1.msra.mxu0 %v51
    %93 = vmatprep.subr.mxu0 0.0
    %94 = vmatpush1.msra.mxu0 %v50
    %95 = vmatprep.subr.mxu0 0.0
    %96 = vmatpush1.msra.mxu0 %v49
    %97 = vmatprep.subr.mxu0 0.0
    %98 = vmatpush2.msra.mxu0 0.0
    %99 = vmatprep.subr.mxu0 0.0
    %100 = vmatpush2.msra.mxu0 0.0
    %101 = vmatprep.subr.mxu0 0.0
    %102 = vmatpush2.msra.mxu0 0.0
    %103 = vmatprep.subr.mxu0 0.0
    %104 = vmatpush2.msra.mxu0 0.0
    %105 = vmatprep.subr.mxu0 0.0
    %106 = vmatpush2.msra.mxu0 0.0
    %107 = vmatprep.subr.mxu0 0.0
    %108 = vmatpush2.msra.mxu0 0.0
    %109 = vmatprep.subr.mxu0 0.0
    %110 = vmatpush2.msra.mxu0 0.0
    %111 = vmatprep.subr.mxu0 0.0
    %112 = vmatpush2.msra.mxu0 0.0
    %113 = vmatprep.subr.mxu0 0.0
    %114 = vmatpush2.msra.mxu0 0.0
    %115 = vmatprep.subr.mxu0 0.0
    %116 = vmatpush2.msra.mxu0 0.0
    %117 = vmatprep.subr.mxu0 0.0
    %118 = vmatpush2.msra.mxu0 0.0
    %119 = vmatprep.subr.mxu0 0.0
    %120 = vmatpush2.msra.mxu0 0.0
    %121 = vmatprep.subr.mxu0 0.0
    %122 = vmatpush2.msra.mxu0 0.0
    %123 = vmatprep.subr.mxu0 0.0
    %124 = vmatpush2.msra.mxu0 0.0
    %125 = vmatprep.subr.mxu0 0.0
    %126 = vmatpush2.msra.mxu0 0.0
    %127 = vmatprep.subr.mxu0 0.0
    %128 = vmatpush2.msra.mxu0 0.0
    %129 = vmatprep.mubr.f32.mxu0 0.0
    %130 = vmatmul.mubr.f32.gmra.mxu0 %v47
    %v131 = vpop.f32.mrf.mxu0
    %v132 = vadd.f32 0.0, %v131
    %v133 = vpop.f32.mrf.mxu0
    %134 = vmatprep.mubr.f32.mxu0 0.0
    %135 = vmatmul.mubr.f32.gmra.mxu0 %v48
    %v136 = vpop.f32.mrf.mxu0
    %v137 = vadd.f32 0.0, %v136
    %v138 = vpop.f32.mrf.mxu0
    %139 = vdwg.mxu0
    %140 = vst [vmem:[#allocation5] sm:$0xff] %v132
    %141 = vst [vmem:[#allocation5 + $0x8] sm:$0xff] %v137
    %vm142 = vcmp.lt.s32.totalorder %v36, 65
    %v143 = vsel %vm142, %v132, -1e+30
    %v144 = vsel %vm142, %v137, -1e+30
    %145 = vmax.xlane.f32.xlu0 %v143
    %v146 = vpop.xlane.xlu0 %145
    %147 = vmax.xlane.f32.xlu0 %v144
    %v148 = vpop.xlane.xlu0 %147
    %v149 = vsub.f32 %v143, %v146
    %v150 = vsub.f32 %v144, %v148
    %v151 = vmul.f32 %v149, 1.442695
    %v152 = vpow.pop %v151
    %v153 = vmul.f32 %v150, 1.442695
    %v154 = vpow.pop %v153
    %155 = vadd.xlane.f32.xlu0 %v152
    %v156 = vpop.xlane.xlu0 %155
    %157 = vadd.xlane.f32.xlu0 %v154
    %v158 = vpop.xlane.xlu0 %157
    %v159 = vlog2.pop %v156
    %v160 = vmul.f32 %v159, 0.6931472
    %v161 = vlog2.pop %v158
    %v162 = vmul.f32 %v161, 0.6931472
    %v163 = vadd.f32 %v146, %v160
    %v164 = vadd.f32 %v148, %v162
    %165 = vset.pattern.permute.xlu0 0
    %166 = vperm.xlu0 %165, %v33
    %v167 = vpop.permute.xlu0 %166
    %168 = vset.pattern.permute.xlu0 0
    %169 = vperm.xlu0 %168, %v34
    %v170 = vpop.permute.xlu0 %169
    %vm171 = vcmp.eq.s32.totalorder %v36, %v167
    %vm172 = vcmp.eq.s32.totalorder %v36, %v170
    %v173 = vsel %vm171, %v132, 0.0
    %v174 = vsel %vm172, %v137, 0.0
    %175 = vadd.xlane.f32.xlu0 %v173
    %v176 = vpop.xlane.xlu0 %175
    %177 = vadd.xlane.f32.xlu0 %v174
    %v178 = vpop.xlane.xlu0 %177
    %v179 = vsub.f32 %v163, %v176
    %v180 = vsub.f32 %v164, %v178
    %vm181 = vcmask 7168
    %182 = vst.msk [vmem:[%s4] sm:$0xff] %vm181, %v179
    %183 = vst.msk [vmem:[%s4 + $0x8] sm:$0xff] %vm181, %v180
    // Predicated region
    $region18: #{tpu_custom_call.1} parent=1 // pred_check
      _
    $region19: #{tpu_custom_call.1} parent=1 // pred_check_branch
      %185 = sbr.rel (0) target = $region21
    $region20: #{tpu_custom_call.1} parent=1 // pred_region
      %s187 = ssub.s32 256, 256
      %188 = vsyncadd [#allocation4], %s187
      %s189 = sshll.u32 [#allocation5], 4
      %s190 = int_to_ptr.vmem [resolvable:$true] %s189
      %195 = dma.vmem_to_hbm [thread:$0]  %s190, 256, %s3, [#allocation4], 128, 128, 8
    $region21: #{tpu_custom_call.1} parent=1 // pred_fallthru
      _
    // Predicated region
    $region22: #{tpu_custom_call.1} parent=1 // pred_check
      _
    $region23: #{tpu_custom_call.1} parent=1 // pred_check_branch
      %197 = sbr.rel (0) target = $region25
    $region24: #{tpu_custom_call.1} parent=1 // pred_region
      _
    $region25: #{tpu_custom_call.1} parent=1 // pred_fallthru
      _
    // Predicated region
    $region26: #{tpu_custom_call.1} parent=1 // pred_check
      _
    $region27: #{tpu_custom_call.1} parent=1 // pred_check_branch
      %199 = sbr.rel (0) target = $region29
    $region28: #{tpu_custom_call.1} parent=1 // pred_region
      %200 = dma.done [#allocation4], 256
    $region29: #{tpu_custom_call.1} parent=1 // pred_fallthru
      _
    // Predicated region
    $region30: #{tpu_custom_call.1} parent=1 // pred_check
      _
    $region31: #{tpu_custom_call.1} parent=1 // pred_check_branch
      %202 = sbr.rel (0) target = $region33
    $region32: #{tpu_custom_call.1} parent=1 // pred_region
      _
    $region33: #{tpu_custom_call.1} parent=1 // pred_fallthru
      _
    %203 = vsyncpa [#allocation3], 1
    %204 = vsyncpa [#allocation4], 1

</llo_original>
